<compile_context>
chip_gen: v5e
topology: v5e:2x2
jax: 0.10.0
libtpu: 0.0.40
codegen_flags: <defaults>
</compile_context>

<pallas_src>
import functools

import jax
import jax.numpy as jnp
from jax.experimental import pallas as pl
from jax.experimental.pallas import tpu as pltpu

LANE = 128


def _round_up(n, m):
    return ((n + m - 1) // m) * m


def nfm_kernel(x_ref, wlin_emb_ref, blin_ref, w1_ref, b1_ref, w2_ref, b2_ref,
               out_ref):
    """Fused NFM forward for one batch tile.

    Weight layout (see prepare_params) bakes all lane placement into the
    operands, so the packed output slab is just the sum of three 128-lane
    blocks:
      lin   block: linear_out        at lanes [0:O] and [O:2O]
      inter block: interaction_out   at lanes [0:O] and [2O:3O]
      wemb  block: weighted_embeds   at lanes [3O:3O+K]
      sum -> [total | lin | inter | wemb | 0...]
    """
    x = x_ref[...].astype(jnp.bfloat16)                        # (TB, F)

    # Fused MXU contraction: x @ [Wlin_packed | E_shifted] -> (TB, 256), f32 acc.
    lw = jnp.dot(x, wlin_emb_ref[...], preferred_element_type=jnp.float32)
    lin = lw[:, :LANE] + blin_ref[...]                         # (TB, 128)
    wemb = lw[:, LANE:]                                        # (TB, 128)

    # Interaction MLP: Linear(K,K) -> ReLU -> Linear(K,O); bf16 MXU, f32 accum.
    h = jnp.dot(wemb.astype(jnp.bfloat16), w1_ref[...],
                preferred_element_type=jnp.float32) + b1_ref[...]
    h = jnp.maximum(h, 0.0)
    inter = jnp.dot(h.astype(jnp.bfloat16), w2_ref[...],
                    preferred_element_type=jnp.float32) + b2_ref[...]

    # One dense 128-lane store: [total | lin | inter | wemb | 0-pad].
    out_ref[...] = lin + inter + wemb


def prepare_params(params):
    """One-time layout prep (NOT in the per-call hot path).

    * Pads every matmul N dim to 128 lanes, casts matmul operands to bf16.
    * Bakes the packed-output lane placement into the weights:
        - Wlin^T / blin duplicated into lanes [0:O] and [O:2O]
        - embedding table placed at lanes [3O:3O+K] (W1^T rows shifted to match)
        - W2^T / b2 duplicated into lanes [0:O] and [2O:3O]
      so the kernel's output slab is simply lin_block + inter_block + wemb_block.
    """
    F, K = params["emb"].shape
    O = params["wlin_t"].shape[1]
    assert 3 * O + K <= LANE, (
        "packed single-block output assumes 3*output_dim + k_dim <= 128")

    wlin, emb = params["wlin_t"], params["emb"]
    w1, w2 = params["w1_t"], params["w2_t"]
    blin, b1, b2 = params["blin"], params["b1"], params["b2"]

    wlin_blk = (jnp.zeros((F, LANE), jnp.float32)
                .at[:, 0:O].set(wlin).at[:, O:2 * O].set(wlin))
    emb_blk = jnp.zeros((F, LANE), jnp.float32).at[:, 3 * O:3 * O + K].set(emb)
    wlin_emb = jnp.concatenate([wlin_blk, emb_blk], axis=1).astype(jnp.bfloat16)

    blin_p = (jnp.zeros((1, LANE), jnp.float32)
              .at[:, 0:O].set(blin).at[:, O:2 * O].set(blin))
    w1_p = (jnp.zeros((LANE, LANE), jnp.float32)
            .at[3 * O:3 * O + K, 0:K].set(w1)).astype(jnp.bfloat16)
    b1_p = jnp.zeros((1, LANE), jnp.float32).at[:, 0:K].set(b1)
    w2_p = (jnp.zeros((LANE, LANE), jnp.float32)
            .at[0:K, 0:O].set(w2).at[0:K, 2 * O:3 * O].set(w2)).astype(jnp.bfloat16)
    b2_p = (jnp.zeros((1, LANE), jnp.float32)
            .at[:, 0:O].set(b2).at[:, 2 * O:3 * O].set(b2))

    return {"wlin_emb": wlin_emb, "blin": blin_p, "w1": w1_p, "b1": b1_p,
            "w2": w2_p, "b2": b2_p}


@functools.partial(jax.jit, static_argnames=("k_dim", "output_dim"))
def neural_factorization_forward(x, prepped, *, k_dim, output_dim):
    """x: (B, F) float32; prepped: output of prepare_params.

    Returns the same 4-tuple as the torch module:
    (linear_out + interaction_out, linear_out, interaction_out, weighted_embeddings)
    """
    B, F = x.shape
    O, K = output_dim, k_dim

    # Up to 512-row batch tiles (amortizes per-step overhead, bigger DMAs), but
    # keep >= 2 grid steps when B allows so the "parallel" axis can shard across
    # both TensorCores on v7x.  Sublane-aligned (multiple of 8).
    tile_b = min(512, _round_up(max(pl.cdiv(B, 2), 1), 8))
    grid = (pl.cdiv(B, tile_b),)                 # ragged last tile handled by Pallas
    resident = lambda i: (0, 0)                  # weights/biases stay resident in VMEM

    slab = pl.pallas_call(
        nfm_kernel,
        out_shape=jax.ShapeDtypeStruct((B, LANE), jnp.float32),
        grid_spec=pltpu.PrefetchScalarGridSpec(
            num_scalar_prefetch=0,
            grid=grid,
            in_specs=[
                pl.BlockSpec((tile_b, F), lambda i: (i, 0)),   # x: no feature-dim pad
                pl.BlockSpec((F, 2 * LANE), resident),         # [Wlin_packed | E_shifted]
                pl.BlockSpec((1, LANE), resident),             # blin (packed)
                pl.BlockSpec((LANE, LANE), resident),          # W1^T (row-shifted)
                pl.BlockSpec((1, LANE), resident),             # b1
                pl.BlockSpec((LANE, LANE), resident),          # W2^T (packed)
                pl.BlockSpec((1, LANE), resident),             # b2 (packed)
            ],
            out_specs=pl.BlockSpec((tile_b, LANE), lambda i: (i, 0)),
        ),
        compiler_params=pltpu.CompilerParams(
            dimension_semantics=("parallel",),   # batch tiles shard over 2 TCs on v7x
            vmem_limit_bytes=32 * 1024 * 1024,   # safe on v5e/v6e/v7x
        ),
    )(x, prepped["wlin_emb"], prepped["blin"], prepped["w1"], prepped["b1"],
      prepped["w2"], prepped["b2"])

    total = slab[:, 0:O]
    lin = slab[:, O:2 * O]
    inter = slab[:, 2 * O:3 * O]
    wemb = slab[:, 3 * O:3 * O + K]
    return total, lin, inter, wemb


def init_params(key, num_features, k_dim, output_dim):
    """Deterministic synthetic parameters matching the torch module shapes."""
    ks = jax.random.split(key, 6)
    # torch shapes: Embedding.weight (F, K); Linear(F,O).weight (O, F);
    # Linear(K,K).weight (K, K); Linear(K,O).weight (O, K)
    emb = jax.random.normal(ks[0], (num_features, k_dim), jnp.float32) * 0.1
    wlin = jax.random.normal(ks[1], (output_dim, num_features), jnp.float32) * 0.1
    blin = jax.random.normal(ks[2], (1, output_dim), jnp.float32) * 0.1
    w1 = jax.random.normal(ks[3], (k_dim, k_dim), jnp.float32) * 0.1
    b1 = jax.random.normal(ks[4], (1, k_dim), jnp.float32) * 0.1
    w2 = jax.random.normal(ks[5], (output_dim, k_dim), jnp.float32) * 0.1
    b2 = jnp.zeros((1, output_dim), jnp.float32)
    return {
        "emb": emb,                 # (F, K)
        "wlin_t": wlin.T,           # (F, O)
        "blin": blin,               # (1, O)
        "w1_t": w1.T,               # (K, K)
        "b1": b1,                   # (1, K)
        "w2_t": w2.T,               # (K, O)
        "b2": b2,                   # (1, O)
    }


def reference_forward(x, params):
    lin = x @ params["wlin_t"] + params["blin"]
    wemb = x @ params["emb"]
    h = jnp.maximum(wemb @ params["w1_t"] + params["b1"], 0.0)
    inter = h @ params["w2_t"] + params["b2"]
    return lin + inter, lin, inter, wemb


def _check(x, params, prepped, k_dim, output_dim, tol=5e-2):
    outs = jax.block_until_ready(
        neural_factorization_forward(x, prepped, k_dim=k_dim, output_dim=output_dim))
    refs = reference_forward(x, params)
    for o, r in zip(outs, refs):
        assert o.shape == r.shape and o.dtype == r.dtype
        # bf16 matmul operands (f32 accumulation) -> looser tolerance than pure f32.
        err = float(jnp.max(jnp.abs(o - r)))
        assert err < tol, err
    return outs


if __name__ == "__main__":
    F, K, O = 16, 32, 8   # num_features, k_dim, output_dim

    key = jax.random.PRNGKey(0)
    kx, kx2, kp = jax.random.split(key, 3)
    params = init_params(kp, F, K, O)
    prepped = prepare_params(params)   # one-time weight packing (off the hot path)

    # Small batch: single grid step.
    x_small = jax.random.normal(kx, (8, F), jnp.float32)
    _check(x_small, params, prepped, K, O)

    # Larger batch: 2 grid steps (tile_b = 72) + ragged last tile (136 % 72 != 0).
    x_big = jax.random.normal(kx2, (136, F), jnp.float32)
    _check(x_big, params, prepped, K, O)

    print("KERNEL_OK")
</pallas_src>

<mosaic_0001>
module attributes {stable_mosaic.version = 11 : i64} {
  func.func @nfm_kernel(%arg0: i32, %arg1: memref<8x16xf32, #tpu.memory_space<vmem>>, %arg2: memref<16x256xbf16, #tpu.memory_space<vmem>>, %arg3: memref<1x128xf32, #tpu.memory_space<vmem>>, %arg4: memref<128x128xbf16, #tpu.memory_space<vmem>>, %arg5: memref<1x128xf32, #tpu.memory_space<vmem>>, %arg6: memref<128x128xbf16, #tpu.memory_space<vmem>>, %arg7: memref<1x128xf32, #tpu.memory_space<vmem>>, %arg8: memref<8x128xf32, #tpu.memory_space<vmem>>) attributes {dimension_semantics = [#tpu.dimension_semantics<parallel>], iteration_bounds = array<i64: 1>, scalar_prefetch = 0 : i64, scratch_operands = 0 : i64, tpu.core_type = #tpu.core_type<tc>, window_params = [{transform_indices = @transform_0, window_bounds = array<i64: 8, 16>}, {pipeline_mode = #tpu.pipeline_mode<synchronous>, transform_indices = @transform_1, window_bounds = array<i64: 16, 256>}, {pipeline_mode = #tpu.pipeline_mode<synchronous>, transform_indices = @transform_2, window_bounds = array<i64: 1, 128>}, {pipeline_mode = #tpu.pipeline_mode<synchronous>, transform_indices = @transform_3, window_bounds = array<i64: 128, 128>}, {pipeline_mode = #tpu.pipeline_mode<synchronous>, transform_indices = @transform_4, window_bounds = array<i64: 1, 128>}, {pipeline_mode = #tpu.pipeline_mode<synchronous>, transform_indices = @transform_5, window_bounds = array<i64: 128, 128>}, {pipeline_mode = #tpu.pipeline_mode<synchronous>, transform_indices = @transform_6, window_bounds = array<i64: 1, 128>}, {transform_indices = @transform_7, window_bounds = array<i64: 8, 128>}]} {
    %c0 = arith.constant 0 : index
    %c0_0 = arith.constant 0 : index
    %0 = vector.load %arg1[%c0, %c0_0] : memref<8x16xf32, #tpu.memory_space<vmem>>, vector<8x16xf32>
    %1 = arith.truncf %0 : vector<8x16xf32> to vector<8x16xbf16>
    %c0_1 = arith.constant 0 : index
    %c0_2 = arith.constant 0 : index
    %2 = vector.load %arg2[%c0_1, %c0_2] : memref<16x256xbf16, #tpu.memory_space<vmem>>, vector<16x256xbf16>
    %cst = arith.constant dense<0.000000e+00> : vector<8x256xf32>
    %3 = tpu.matmul %1, %2, %cst {dimension_numbers = #tpu.dot_dimension_numbers<[1], [0], [0], [1], [0, 0, 1, 1], [], []>} : vector<8x16xbf16>, vector<16x256xbf16>, vector<8x256xf32> -> vector<8x256xf32>
    %4 = vector.extract_strided_slice %3 {offsets = [0, 0], sizes = [8, 128], strides = [1, 1]} : vector<8x256xf32> to vector<8x128xf32>
    %c0_3 = arith.constant 0 : index
    %c0_4 = arith.constant 0 : index
    %5 = vector.load %arg3[%c0_3, %c0_4] : memref<1x128xf32, #tpu.memory_space<vmem>>, vector<1x128xf32>
    %6 = vector.broadcast %5 : vector<1x128xf32> to vector<8x128xf32>
    %7 = arith.addf %4, %6 : vector<8x128xf32>
    %8 = vector.extract_strided_slice %3 {offsets = [0, 128], sizes = [8, 128], strides = [1, 1]} : vector<8x256xf32> to vector<8x128xf32>
    %9 = arith.truncf %8 : vector<8x128xf32> to vector<8x128xbf16>
    %c0_5 = arith.constant 0 : index
    %c0_6 = arith.constant 0 : index
    %10 = vector.load %arg4[%c0_5, %c0_6] : memref<128x128xbf16, #tpu.memory_space<vmem>>, vector<128x128xbf16>
    %cst_7 = arith.constant dense<0.000000e+00> : vector<8x128xf32>
    %11 = tpu.matmul %9, %10, %cst_7 {dimension_numbers = #tpu.dot_dimension_numbers<[1], [0], [0], [1], [0, 0, 1, 1], [], []>} : vector<8x128xbf16>, vector<128x128xbf16>, vector<8x128xf32> -> vector<8x128xf32>
    %c0_8 = arith.constant 0 : index
    %c0_9 = arith.constant 0 : index
    %12 = vector.load %arg5[%c0_8, %c0_9] : memref<1x128xf32, #tpu.memory_space<vmem>>, vector<1x128xf32>
    %13 = vector.broadcast %12 : vector<1x128xf32> to vector<8x128xf32>
    %14 = arith.addf %11, %13 : vector<8x128xf32>
    %cst_10 = arith.constant 0.000000e+00 : f32
    %15 = vector.broadcast %cst_10 : f32 to vector<8x128xf32>
    %16 = arith.maximumf %14, %15 : vector<8x128xf32>
    %17 = arith.truncf %16 : vector<8x128xf32> to vector<8x128xbf16>
    %c0_11 = arith.constant 0 : index
    %c0_12 = arith.constant 0 : index
    %18 = vector.load %arg6[%c0_11, %c0_12] : memref<128x128xbf16, #tpu.memory_space<vmem>>, vector<128x128xbf16>
    %cst_13 = arith.constant dense<0.000000e+00> : vector<8x128xf32>
    %19 = tpu.matmul %17, %18, %cst_13 {dimension_numbers = #tpu.dot_dimension_numbers<[1], [0], [0], [1], [0, 0, 1, 1], [], []>} : vector<8x128xbf16>, vector<128x128xbf16>, vector<8x128xf32> -> vector<8x128xf32>
    %c0_14 = arith.constant 0 : index
    %c0_15 = arith.constant 0 : index
    %20 = vector.load %arg7[%c0_14, %c0_15] : memref<1x128xf32, #tpu.memory_space<vmem>>, vector<1x128xf32>
    %21 = vector.broadcast %20 : vector<1x128xf32> to vector<8x128xf32>
    %22 = arith.addf %19, %21 : vector<8x128xf32>
    %23 = arith.addf %7, %22 : vector<8x128xf32>
    %24 = arith.addf %23, %8 : vector<8x128xf32>
    %c0_16 = arith.constant 0 : index
    %c0_17 = arith.constant 0 : index
    %25 = vector.load %arg8[%c0_16, %c0_17] : memref<8x128xf32, #tpu.memory_space<vmem>>, vector<8x128xf32>
    tpu.vector_store %arg8[%c0_16, %c0_17], %24 {strides = array<i32>} : memref<8x128xf32, #tpu.memory_space<vmem>>, vector<8x128xf32>,
    return
  }
  func.func @transform_0(%arg0: i32) -> (i32, i32) {
    %c0_i32 = arith.constant 0 : i32
    %c0_i32_0 = arith.constant 0 : i32
    return %arg0, %c0_i32 : i32, i32
  }
  func.func @transform_1(%arg0: i32) -> (i32, i32) {
    %c0_i32 = arith.constant 0 : i32
    %c0_i32_0 = arith.constant 0 : i32
    %c0_i32_1 = arith.constant 0 : i32
    return %c0_i32, %c0_i32_0 : i32, i32
  }
  func.func @transform_2(%arg0: i32) -> (i32, i32) {
    %c0_i32 = arith.constant 0 : i32
    %c0_i32_0 = arith.constant 0 : i32
    %c0_i32_1 = arith.constant 0 : i32
    return %c0_i32, %c0_i32_0 : i32, i32
  }
  func.func @transform_3(%arg0: i32) -> (i32, i32) {
    %c0_i32 = arith.constant 0 : i32
    %c0_i32_0 = arith.constant 0 : i32
    %c0_i32_1 = arith.constant 0 : i32
    return %c0_i32, %c0_i32_0 : i32, i32
  }
  func.func @transform_4(%arg0: i32) -> (i32, i32) {
    %c0_i32 = arith.constant 0 : i32
    %c0_i32_0 = arith.constant 0 : i32
    %c0_i32_1 = arith.constant 0 : i32
    return %c0_i32, %c0_i32_0 : i32, i32
  }
  func.func @transform_5(%arg0: i32) -> (i32, i32) {
    %c0_i32 = arith.constant 0 : i32
    %c0_i32_0 = arith.constant 0 : i32
    %c0_i32_1 = arith.constant 0 : i32
    return %c0_i32, %c0_i32_0 : i32, i32
  }
  func.func @transform_6(%arg0: i32) -> (i32, i32) {
    %c0_i32 = arith.constant 0 : i32
    %c0_i32_0 = arith.constant 0 : i32
    %c0_i32_1 = arith.constant 0 : i32
    return %c0_i32, %c0_i32_0 : i32, i32
  }
  func.func @transform_7(%arg0: i32) -> (i32, i32) {
    %c0_i32 = arith.constant 0 : i32
    %c0_i32_0 = arith.constant 0 : i32
    return %arg0, %c0_i32 : i32, i32
  }
}

</mosaic_0001>

<llo_original>
// kernel: neural_factorization_forward.1
$region0: #{neural_factorization_forward.1}
  #allocation0 [shape = 'u32[]', space=smem, size = 0x4, offset = 0x4, fixed_abs, tag = 'smem constant byte address 0x4 - core index']
  #allocation1 [shape = 'u32[72,128]{1,0:T(1,128)}', space=vmem, size = 0x9000, scoped, tag = 'internal scratch']
  %s0 = inlined_call_operand.hbm [shape: f32[8,16], index: 0, kind: input, shape index: {}]
  %s1 = inlined_call_operand.hbm [shape: bf16[16,256], index: 1, kind: input, shape index: {}]
  %s2 = inlined_call_operand.vmem [shape: f32[1,128], index: 2, kind: input, shape index: {}]
  %s3 = inlined_call_operand.hbm [shape: bf16[128,128], index: 3, kind: input, shape index: {}]
  %s4 = inlined_call_operand.vmem [shape: f32[1,128], index: 4, kind: input, shape index: {}]
  %s5 = inlined_call_operand.hbm [shape: bf16[128,128], index: 5, kind: input, shape index: {}]
  %s6 = inlined_call_operand.vmem [shape: f32[1,128], index: 6, kind: input, shape index: {}]
  %s7 = inlined_call_operand.vmem [shape: f32[8,128], index: 7, kind: output, shape index: {}]
  %s8 = sld [smem:[#allocation0]]
  $region54: #{neural_factorization_forward.1} parent=0
    _
  %s10 = ssub.s32 1, %s8
  %s11 = scalar_select 0, %s10, %s8
  $region1: #{neural_factorization_forward.1} parent=0
    #allocation2 [shape = 'u8[4096]{0}', space=vmem, size = 0x1000, scoped, tag = 'input window, operand 0, single buffered']
    #allocation3 [shape = 's32[1]{0}', space=sflag, size = 0x4, scoped, tag = 'scoped memory for neural_factorization_forward.1']
    #allocation4 [shape = 'u8[8192]{0}', space=vmem, size = 0x2000, scoped, tag = 'input window, operand 1, single buffered']
    #allocation5 [shape = 's32[1]{0}', space=sflag, size = 0x4, scoped, tag = 'scoped memory for neural_factorization_forward.1']
    #allocation6 [shape = 'u8[32768]{0}', space=vmem, size = 0x8000, scoped, tag = 'input window, operand 3, single buffered']
    #allocation7 [shape = 'u8[32768]{0}', space=vmem, size = 0x8000, scoped, tag = 'input window, operand 5, single buffered']
    #allocation8 [shape = 's32[1]{0}', space=sflag, size = 0x4, scoped, tag = 'scoped memory for neural_factorization_forward.1']
    %12 = vsyncpa [#allocation3], 0
    %13 = vsyncpa [#allocation5], 0
    %14 = vsyncpa [#allocation8], 0
    // Predicated region
    $region2: #{neural_factorization_forward.1} parent=1 // pred_check
      _
    $region3: #{neural_factorization_forward.1} parent=1 // pred_check_branch
      %16 = sbr.rel (0) target = $region5
    $region4: #{neural_factorization_forward.1} parent=1 // pred_region
      %18 = vsyncadd [#allocation3], 0
      %s20 = sshll.u32 %s0, 4
      %s21 = int_to_ptr.hbm [resolvable:$true] %s20
      %s22 = sshll.u32 [#allocation2], 4
      %s23 = int_to_ptr.vmem [resolvable:$true] %s22
      %25 = dma.hbm_to_vmem [thread:$0]  %s21, 128, %s23, [#allocation3]
    $region5: #{neural_factorization_forward.1} parent=1 // pred_fallthru
      _
    // Predicated region
    $region6: #{neural_factorization_forward.1} parent=1 // pred_check
      _
    $region7: #{neural_factorization_forward.1} parent=1 // pred_check_branch
      %27 = sbr.rel (0) target = $region9
    $region8: #{neural_factorization_forward.1} parent=1 // pred_region
      %29 = vsyncadd [#allocation5], 0
      %s30 = sshll.u32 %s1, 4
      %s31 = int_to_ptr.hbm [resolvable:$true] %s30
      %s32 = sshll.u32 [#allocation4], 4
      %s33 = int_to_ptr.vmem [resolvable:$true] %s32
      %38 = dma.hbm_to_vmem [thread:$0]  %s31, 256, %s33, [#allocation5], 128, 128, 8
    $region9: #{neural_factorization_forward.1} parent=1 // pred_fallthru
      _
    // Predicated region
    $region10: #{neural_factorization_forward.1} parent=1 // pred_check
      _
    $region11: #{neural_factorization_forward.1} parent=1 // pred_check_branch
      %40 = sbr.rel (0) target = $region13
    $region12: #{neural_factorization_forward.1} parent=1 // pred_region
      _
    $region13: #{neural_factorization_forward.1} parent=1 // pred_fallthru
      _
    // Predicated region
    $region14: #{neural_factorization_forward.1} parent=1 // pred_check
      _
    $region15: #{neural_factorization_forward.1} parent=1 // pred_check_branch
      %42 = sbr.rel (0) target = $region17
    $region16: #{neural_factorization_forward.1} parent=1 // pred_region
      %44 = vsyncadd [#allocation5], 0
      %s45 = sshll.u32 %s3, 4
      %s46 = int_to_ptr.hbm [resolvable:$true] %s45
      %s47 = sshll.u32 [#allocation6], 4
      %s48 = int_to_ptr.vmem [resolvable:$true] %s47
      %53 = dma.hbm_to_vmem [thread:$0]  %s46, 1024, %s48, [#allocation5], 64, 64, 4
    $region17: #{neural_factorization_forward.1} parent=1 // pred_fallthru
      _
    // Predicated region
    $region18: #{neural_factorization_forward.1} parent=1 // pred_check
      _
    $region19: #{neural_factorization_forward.1} parent=1 // pred_check_branch
      %55 = sbr.rel (0) target = $region21
    $region20: #{neural_factorization_forward.1} parent=1 // pred_region
      _
    $region21: #{neural_factorization_forward.1} parent=1 // pred_fallthru
      _
    // Predicated region
    $region22: #{neural_factorization_forward.1} parent=1 // pred_check
      _
    $region23: #{neural_factorization_forward.1} parent=1 // pred_check_branch
      %57 = sbr.rel (0) target = $region25
    $region24: #{neural_factorization_forward.1} parent=1 // pred_region
      %59 = vsyncadd [#allocation8], 0
      %s60 = sshll.u32 %s5, 4
      %s61 = int_to_ptr.hbm [resolvable:$true] %s60
      %s62 = sshll.u32 [#allocation7], 4
      %s63 = int_to_ptr.vmem [resolvable:$true] %s62
      %68 = dma.hbm_to_vmem [thread:$0]  %s61, 1024, %s63, [#allocation8], 64, 64, 4
    $region25: #{neural_factorization_forward.1} parent=1 // pred_fallthru
      _
    // Predicated region
    $region26: #{neural_factorization_forward.1} parent=1 // pred_check
      _
    $region27: #{neural_factorization_forward.1} parent=1 // pred_check_branch
      %70 = sbr.rel (0) target = $region29
    $region28: #{neural_factorization_forward.1} parent=1 // pred_region
      _
    $region29: #{neural_factorization_forward.1} parent=1 // pred_fallthru
      _
    // Predicated region
    $region30: #{neural_factorization_forward.1} parent=1 // pred_check
      _
    $region31: #{neural_factorization_forward.1} parent=1 // pred_check_branch
      %72 = sbr.rel (0) target = $region33
    $region32: #{neural_factorization_forward.1} parent=1 // pred_region
      %74 = dma.done [#allocation3], 128
    $region33: #{neural_factorization_forward.1} parent=1 // pred_fallthru
      _
    // Predicated region
    $region34: #{neural_factorization_forward.1} parent=1 // pred_check
      _
    $region35: #{neural_factorization_forward.1} parent=1 // pred_check_branch
      %76 = sbr.rel (0) target = $region37
    $region36: #{neural_factorization_forward.1} parent=1 // pred_region
      %78 = dma.done [#allocation5], 256
    $region37: #{neural_factorization_forward.1} parent=1 // pred_fallthru
      _
    // Predicated region
    $region38: #{neural_factorization_forward.1} parent=1 // pred_check
      _
    $region39: #{neural_factorization_forward.1} parent=1 // pred_check_branch
      %80 = sbr.rel (0) target = $region41
    $region40: #{neural_factorization_forward.1} parent=1 // pred_region
      %82 = dma.done [#allocation5], 1024
    $region41: #{neural_factorization_forward.1} parent=1 // pred_fallthru
      _
    // Predicated region
    $region42: #{neural_factorization_forward.1} parent=1 // pred_check
      _
    $region43: #{neural_factorization_forward.1} parent=1 // pred_check_branch
      %84 = sbr.rel (0) target = $region45
    $region44: #{neural_factorization_forward.1} parent=1 // pred_region
      %86 = dma.done [#allocation8], 1024
    $region45: #{neural_factorization_forward.1} parent=1 // pred_fallthru
      _
    %v88 = vld [vmem:[#allocation2] sm:$0xff]
    %v89 = vpack.c.bf16 %v88, %v88
    %v90 = vld [vmem:[#allocation4] sm:$0xff]
    %v91 = vld [vmem:[#allocation4 + $0x8] sm:$0xff]
    %v94 = vunpack.c.l.b16 %v90
    %v95 = vunpack.c.h.b16 %v90
    %v96 = vunpack.c.l.b16 %v91
    %v97 = vunpack.c.h.b16 %v91
    %v98 = vpack.c.b16 %v96, %v94
    %v99 = vpack.c.b16 %v97, %v95
    %vm102 = vcmask 130048
    %v104 = vsel %vm102, %v89, 0
    %106 = vmatpush.bf16.msra.mxu0 0
    %107 = vmatpush.bf16.msra.mxu0 0
    %108 = vmatpush.bf16.msra.mxu0 0
    %109 = vmatpush.bf16.msra.mxu0 0
    %110 = vmatpush.bf16.msra.mxu0 0
    %111 = vmatpush.bf16.msra.mxu0 0
    %112 = vmatpush.bf16.msra.mxu0 0
    %113 = vmatpush.bf16.msra.mxu0 %v98
    %114 = vmatmul.bf16.gmra.mxu0 %v104
    %v115 = vpop.f32.mrf.mxu0
    %v116 = vadd.f32 0.0, %v115
    %v117 = vpop.f32.mrf.mxu0
    %118 = vdwg.mxu0
    %119 = vmatpush.bf16.msra.mxu0 0
    %120 = vmatpush.bf16.msra.mxu0 0
    %121 = vmatpush.bf16.msra.mxu0 0
    %122 = vmatpush.bf16.msra.mxu0 0
    %123 = vmatpush.bf16.msra.mxu0 0
    %124 = vmatpush.bf16.msra.mxu0 0
    %125 = vmatpush.bf16.msra.mxu0 0
    %126 = vmatpush.bf16.msra.mxu0 %v99
    %127 = vmatmul.bf16.gmra.mxu0 %v104
    %v128 = vpop.f32.mrf.mxu0
    %v129 = vadd.f32 0.0, %v128
    %v130 = vpop.f32.mrf.mxu0
    %131 = vdwg.mxu0
    %v132 = vld [vmem:[%s2] sm:$0x1]
    %v134 = vperm.slane %v132, 0
    %v136 = vadd.f32 %v116, %v134
    %v137 = vpack.c.bf16 %v129, %v129
    %v138 = vld [vmem:[#allocation6] sm:$0xf]
    %v139 = vld [vmem:[#allocation6 + $0x4] sm:$0xf]
    %v140 = vld [vmem:[#allocation6 + $0x8] sm:$0xf]
    %v141 = vld [vmem:[#allocation6 + $0xc] sm:$0xf]
    %v142 = vld [vmem:[#allocation6 + $0x10] sm:$0xf]
    %v143 = vld [vmem:[#allocation6 + $0x14] sm:$0xf]
    %v144 = vld [vmem:[#allocation6 + $0x18] sm:$0xf]
    %v145 = vld [vmem:[#allocation6 + $0x1c] sm:$0xf]
    %v146 = vld [vmem:[#allocation6 + $0x20] sm:$0xf]
    %v147 = vld [vmem:[#allocation6 + $0x24] sm:$0xf]
    %v148 = vld [vmem:[#allocation6 + $0x28] sm:$0xf]
    %v149 = vld [vmem:[#allocation6 + $0x2c] sm:$0xf]
    %v150 = vld [vmem:[#allocation6 + $0x30] sm:$0xf]
    %v151 = vld [vmem:[#allocation6 + $0x34] sm:$0xf]
    %v152 = vld [vmem:[#allocation6 + $0x38] sm:$0xf]
    %v153 = vld [vmem:[#allocation6 + $0x3c] sm:$0xf]
    %v154 = vld [vmem:[%s4] sm:$0x1]
    %v156 = vperm.slane %v154, 0
    %v174 = vunpack.c.l.b16 %v138
    %v175 = vunpack.c.l.b16 %v139
    %v176 = vunpack.c.l.b16 %v140
    %v177 = vunpack.c.l.b16 %v141
    %v178 = vunpack.c.l.b16 %v142
    %v179 = vunpack.c.l.b16 %v143
    %v180 = vunpack.c.l.b16 %v144
    %v181 = vunpack.c.l.b16 %v145
    %v182 = vunpack.c.l.b16 %v146
    %v183 = vunpack.c.l.b16 %v147
    %v184 = vunpack.c.l.b16 %v148
    %v185 = vunpack.c.l.b16 %v149
    %v186 = vunpack.c.l.b16 %v150
    %v187 = vunpack.c.l.b16 %v151
    %v188 = vunpack.c.l.b16 %v152
    %v189 = vunpack.c.l.b16 %v153
    %v190 = vpack.c.b16 %v175, %v174
    %v191 = vpack.c.b16 %v177, %v176
    %v192 = vpack.c.b16 %v179, %v178
    %v193 = vpack.c.b16 %v181, %v180
    %v194 = vpack.c.b16 %v183, %v182
    %v195 = vpack.c.b16 %v185, %v184
    %v196 = vpack.c.b16 %v187, %v186
    %v197 = vpack.c.b16 %v189, %v188
    %206 = vmatpush.bf16.msra.mxu0 %v197
    %207 = vmatpush.bf16.msra.mxu0 %v196
    %208 = vmatpush.bf16.msra.mxu0 %v195
    %209 = vmatpush.bf16.msra.mxu0 %v194
    %210 = vmatpush.bf16.msra.mxu0 %v193
    %211 = vmatpush.bf16.msra.mxu0 %v192
    %212 = vmatpush.bf16.msra.mxu0 %v191
    %213 = vmatpush.bf16.msra.mxu0 %v190
    %214 = vmatmul.bf16.gmra.mxu0 %v137
    %v215 = vpop.f32.mrf.mxu0
    %v216 = vadd.f32 %v156, %v215
    %v217 = vpop.f32.mrf.mxu0
    %218 = vdwg.mxu0
    %v219 = vmax.f32 %v216, 0.0
    %v220 = vpack.c.bf16 %v219, %v219
    %v221 = vld [vmem:[#allocation7] sm:$0xf]
    %v222 = vld [vmem:[#allocation7 + $0x4] sm:$0xf]
    %v223 = vld [vmem:[#allocation7 + $0x8] sm:$0xf]
    %v224 = vld [vmem:[#allocation7 + $0xc] sm:$0xf]
    %v225 = vld [vmem:[#allocation7 + $0x10] sm:$0xf]
    %v226 = vld [vmem:[#allocation7 + $0x14] sm:$0xf]
    %v227 = vld [vmem:[#allocation7 + $0x18] sm:$0xf]
    %v228 = vld [vmem:[#allocation7 + $0x1c] sm:$0xf]
    %v229 = vld [vmem:[#allocation7 + $0x20] sm:$0xf]
    %v230 = vld [vmem:[#allocation7 + $0x24] sm:$0xf]
    %v231 = vld [vmem:[#allocation7 + $0x28] sm:$0xf]
    %v232 = vld [vmem:[#allocation7 + $0x2c] sm:$0xf]
    %v233 = vld [vmem:[#allocation7 + $0x30] sm:$0xf]
    %v234 = vld [vmem:[#allocation7 + $0x34] sm:$0xf]
    %v235 = vld [vmem:[#allocation7 + $0x38] sm:$0xf]
    %v236 = vld [vmem:[#allocation7 + $0x3c] sm:$0xf]
    %v237 = vld [vmem:[%s6] sm:$0x1]
    %v239 = vperm.slane %v237, 0
    %v257 = vunpack.c.l.b16 %v221
    %v258 = vunpack.c.l.b16 %v222
    %v259 = vunpack.c.l.b16 %v223
    %v260 = vunpack.c.l.b16 %v224
    %v261 = vunpack.c.l.b16 %v225
    %v262 = vunpack.c.l.b16 %v226
    %v263 = vunpack.c.l.b16 %v227
    %v264 = vunpack.c.l.b16 %v228
    %v265 = vunpack.c.l.b16 %v229
    %v266 = vunpack.c.l.b16 %v230
    %v267 = vunpack.c.l.b16 %v231
    %v268 = vunpack.c.l.b16 %v232
    %v269 = vunpack.c.l.b16 %v233
    %v270 = vunpack.c.l.b16 %v234
    %v271 = vunpack.c.l.b16 %v235
    %v272 = vunpack.c.l.b16 %v236
    %v273 = vpack.c.b16 %v258, %v257
    %v274 = vpack.c.b16 %v260, %v259
    %v275 = vpack.c.b16 %v262, %v261
    %v276 = vpack.c.b16 %v264, %v263
    %v277 = vpack.c.b16 %v266, %v265
    %v278 = vpack.c.b16 %v268, %v267
    %v279 = vpack.c.b16 %v270, %v269
    %v280 = vpack.c.b16 %v272, %v271
    %289 = vmatpush.bf16.msra.mxu0 %v280
    %290 = vmatpush.bf16.msra.mxu0 %v279
    %291 = vmatpush.bf16.msra.mxu0 %v278
    %292 = vmatpush.bf16.msra.mxu0 %v277
    %293 = vmatpush.bf16.msra.mxu0 %v276
    %294 = vmatpush.bf16.msra.mxu0 %v275
    %295 = vmatpush.bf16.msra.mxu0 %v274
    %296 = vmatpush.bf16.msra.mxu0 %v273
    %297 = vmatmul.bf16.gmra.mxu0 %v220
    %v298 = vpop.f32.mrf.mxu0
    %v299 = vadd.f32 %v239, %v298
    %v300 = vpop.f32.mrf.mxu0
    %301 = vdwg.mxu0
    %v302 = vadd.f32 %v136, %v299
    %v303 = vadd.f32 %v302, %v129
    %304 = vst [vmem:[%s7] sm:$0xff] %v303
    // Predicated region
    $region46: #{neural_factorization_forward.1} parent=1 // pred_check
      _
    $region47: #{neural_factorization_forward.1} parent=1 // pred_check_branch
      %306 = sbr.rel (0) target = $region49
    $region48: #{neural_factorization_forward.1} parent=1 // pred_region
      _
    $region49: #{neural_factorization_forward.1} parent=1 // pred_fallthru
      _
    // Predicated region
    $region50: #{neural_factorization_forward.1} parent=1 // pred_check
      _
    $region51: #{neural_factorization_forward.1} parent=1 // pred_check_branch
      %308 = sbr.rel (0) target = $region53
    $region52: #{neural_factorization_forward.1} parent=1 // pred_region
      _
    $region53: #{neural_factorization_forward.1} parent=1 // pred_fallthru
      _
    %309 = vsyncpa [#allocation3], 1
    %310 = vsyncpa [#allocation5], 1
    %311 = vsyncpa [#allocation8], 1

</llo_original>
